<compile_context>
chip_gen: v7x
topology: tpu7x:2x2x1
jax: 0.10.0
libtpu: 0.0.40
codegen_flags: <defaults>
</compile_context>

<pallas_src>
import functools

import jax
import jax.numpy as jnp
import numpy as np
from jax.experimental import pallas as pl
from jax.experimental.pallas import tpu as pltpu

_BN_EPS = 1e-5
_NOISE = 0.2


# ----------------------------------------------------------------------------
# Fused kernels
# ----------------------------------------------------------------------------
def _resnet_eval_kernel(x_ref, w1_ref, b1_ref, g_ref, be_ref, rm_ref, rv_ref,
                        w2_ref, b2_ref, out_ref):
    x = x_ref[...]                                             # (tb, in_size)
    h = jnp.maximum(x, 0.0)                                    # relu(x + 0*noise)
    r = jnp.dot(h, w1_ref[...], preferred_element_type=jnp.float32) + b1_ref[...]
    r = jnp.maximum(r, 0.0)
    # BatchNorm1d, eval mode: running statistics.
    r = (r - rm_ref[...]) * jax.lax.rsqrt(rv_ref[...] + _BN_EPS)
    r = r * g_ref[...] + be_ref[...]
    y = jnp.dot(r, w2_ref[...], preferred_element_type=jnp.float32) + b2_ref[...]
    out_ref[...] = x + y


def _resnet_train_kernel(x_ref, noise_ref, w1_ref, b1_ref, g_ref, be_ref,
                         w2_ref, b2_ref, out_ref):
    x = x_ref[...]                                             # (B, in_size)
    h = jnp.maximum(x + _NOISE * noise_ref[...], 0.0)
    r = jnp.dot(h, w1_ref[...], preferred_element_type=jnp.float32) + b1_ref[...]
    r = jnp.maximum(r, 0.0)
    # BatchNorm1d, train mode: batch statistics (biased variance is what
    # PyTorch uses for the normalization itself).
    mu = jnp.mean(r, axis=0, keepdims=True)
    var = jnp.mean(jnp.square(r - mu), axis=0, keepdims=True)
    r = (r - mu) * jax.lax.rsqrt(var + _BN_EPS)
    r = r * g_ref[...] + be_ref[...]
    y = jnp.dot(r, w2_ref[...], preferred_element_type=jnp.float32) + b2_ref[...]
    out_ref[...] = x + y
    # TODO(synk): BatchNorm running-mean/var momentum update (training-mode
    # side effect) is not reproduced; only the forward value is computed.


# ----------------------------------------------------------------------------
# Wrapper
# ----------------------------------------------------------------------------
def _const(shape):
    return pl.BlockSpec(shape, lambda i: (0,) * len(shape))


@functools.partial(jax.jit, static_argnames=("training",))
def resnet_forward(params, x, noise=None, *, training=False):
    B, in_size = x.shape
    hid = params["fc1_w"].shape[1]

    if training:
        # Batch statistics require the full batch inside one program.
        tb = B
        grid = (1,)
        kernel = _resnet_train_kernel
        in_specs = [
            pl.BlockSpec((tb, in_size), lambda i: (i, 0)),      # x
            pl.BlockSpec((tb, in_size), lambda i: (i, 0)),      # noise
            _const((in_size, hid)), _const((1, hid)),           # fc1
            _const((1, hid)), _const((1, hid)),                 # gamma, beta
            _const((hid, in_size)), _const((1, in_size)),       # fc2
        ]
        args = (x, noise, params["fc1_w"], params["fc1_b"],
                params["bn_gamma"], params["bn_beta"],
                params["fc2_w"], params["fc2_b"])
        semantics = ("arbitrary",)
    else:
        tb = B if B <= 256 else 128
        assert B % tb == 0, "batch must divide the batch tile"
        grid = (B // tb,)
        kernel = _resnet_eval_kernel
        in_specs = [
            pl.BlockSpec((tb, in_size), lambda i: (i, 0)),      # x
            _const((in_size, hid)), _const((1, hid)),           # fc1
            _const((1, hid)), _const((1, hid)),                 # gamma, beta
            _const((1, hid)), _const((1, hid)),                 # running mean/var
            _const((hid, in_size)), _const((1, in_size)),       # fc2
        ]
        args = (x, params["fc1_w"], params["fc1_b"],
                params["bn_gamma"], params["bn_beta"],
                params["bn_rm"], params["bn_rv"],
                params["fc2_w"], params["fc2_b"])
        semantics = ("parallel",)

    return pl.pallas_call(
        kernel,
        out_shape=jax.ShapeDtypeStruct((B, in_size), jnp.float32),
        grid_spec=pltpu.PrefetchScalarGridSpec(
            num_scalar_prefetch=0,
            grid=grid,
            in_specs=in_specs,
            out_specs=pl.BlockSpec((tb, in_size), lambda i: (i, 0)),
        ),
        compiler_params=pltpu.CompilerParams(dimension_semantics=semantics),
    )(*args)


# ----------------------------------------------------------------------------
# Parameters (weights stored transposed so the kernel does x @ W directly).
# ----------------------------------------------------------------------------
def make_params(key, in_size, hid_size):
    ks = jax.random.split(key, 6)
    u = lambda k, s, r: jax.random.uniform(k, s, jnp.float32, -r, r)
    s1 = 1.0 / np.sqrt(in_size)
    s2 = 1.0 / np.sqrt(hid_size)
    return dict(
        fc1_w=u(ks[0], (in_size, hid_size), s1),
        fc1_b=u(ks[1], (1, hid_size), s1),
        fc2_w=u(ks[2], (hid_size, in_size), s2),
        fc2_b=u(ks[3], (1, in_size), s2),
        bn_gamma=jnp.ones((1, hid_size), jnp.float32),
        bn_beta=jnp.zeros((1, hid_size), jnp.float32),
        bn_rm=0.1 * jax.random.normal(ks[4], (1, hid_size), jnp.float32),
        bn_rv=1.0 + 0.1 * jax.random.uniform(ks[5], (1, hid_size), jnp.float32),
    )


# Pure-JAX reference for verification.
def resnet_ref(params, x, noise=None, *, training=False):
    xin = x + _NOISE * noise if training else x
    r = jnp.maximum(xin, 0.0) @ params["fc1_w"] + params["fc1_b"]
    r = jnp.maximum(r, 0.0)
    if training:
        mu = jnp.mean(r, axis=0, keepdims=True)
        var = jnp.mean((r - mu) ** 2, axis=0, keepdims=True)
    else:
        mu, var = params["bn_rm"], params["bn_rv"]
    r = (r - mu) / jnp.sqrt(var + _BN_EPS)
    r = r * params["bn_gamma"] + params["bn_beta"]
    return x + (r @ params["fc2_w"] + params["fc2_b"])


if __name__ == "__main__":
    B, in_size, hid_size = 8, 128, 64   # lane-dense in_size, sublane-aligned batch

    key = jax.random.PRNGKey(0)
    kx, kn, kp = jax.random.split(key, 3)
    params = make_params(kp, in_size, hid_size)
    x = jax.random.normal(kx, (B, in_size), jnp.float32)
    noise = jax.random.normal(kn, (B, in_size), jnp.float32)

    y_eval = resnet_forward(params, x, training=False)
    y_train = resnet_forward(params, x, noise, training=True)
    jax.block_until_ready((y_eval, y_train))

    np.testing.assert_allclose(np.asarray(y_eval),
                               np.asarray(resnet_ref(params, x)),
                               rtol=1e-5, atol=1e-5)
    np.testing.assert_allclose(np.asarray(y_train),
                               np.asarray(resnet_ref(params, x, noise, training=True)),
                               rtol=1e-5, atol=1e-5)

    print("KERNEL_OK")
</pallas_src>

<mosaic_0001>
module attributes {stable_mosaic.version = 11 : i64} {
  func.func @_resnet_eval_kernel(%arg0: i32, %arg1: memref<8x128xf32, #tpu.memory_space<vmem>>, %arg2: memref<128x64xf32, #tpu.memory_space<vmem>>, %arg3: memref<1x64xf32, #tpu.memory_space<vmem>>, %arg4: memref<1x64xf32, #tpu.memory_space<vmem>>, %arg5: memref<1x64xf32, #tpu.memory_space<vmem>>, %arg6: memref<1x64xf32, #tpu.memory_space<vmem>>, %arg7: memref<1x64xf32, #tpu.memory_space<vmem>>, %arg8: memref<64x128xf32, #tpu.memory_space<vmem>>, %arg9: memref<1x128xf32, #tpu.memory_space<vmem>>, %arg10: memref<8x128xf32, #tpu.memory_space<vmem>>) attributes {dimension_semantics = [#tpu.dimension_semantics<parallel>], iteration_bounds = array<i64: 1>, scalar_prefetch = 0 : i64, scratch_operands = 0 : i64, tpu.core_type = #tpu.core_type<tc>, window_params = [{transform_indices = @transform_0, window_bounds = array<i64: 8, 128>}, {pipeline_mode = #tpu.pipeline_mode<synchronous>, transform_indices = @transform_1, window_bounds = array<i64: 128, 64>}, {pipeline_mode = #tpu.pipeline_mode<synchronous>, transform_indices = @transform_2, window_bounds = array<i64: 1, 64>}, {pipeline_mode = #tpu.pipeline_mode<synchronous>, transform_indices = @transform_3, window_bounds = array<i64: 1, 64>}, {pipeline_mode = #tpu.pipeline_mode<synchronous>, transform_indices = @transform_4, window_bounds = array<i64: 1, 64>}, {pipeline_mode = #tpu.pipeline_mode<synchronous>, transform_indices = @transform_5, window_bounds = array<i64: 1, 64>}, {pipeline_mode = #tpu.pipeline_mode<synchronous>, transform_indices = @transform_6, window_bounds = array<i64: 1, 64>}, {pipeline_mode = #tpu.pipeline_mode<synchronous>, transform_indices = @transform_7, window_bounds = array<i64: 64, 128>}, {pipeline_mode = #tpu.pipeline_mode<synchronous>, transform_indices = @transform_8, window_bounds = array<i64: 1, 128>}, {transform_indices = @transform_9, window_bounds = array<i64: 8, 128>}]} {
    %c0 = arith.constant 0 : index
    %c0_0 = arith.constant 0 : index
    %0 = vector.load %arg1[%c0, %c0_0] : memref<8x128xf32, #tpu.memory_space<vmem>>, vector<8x128xf32>
    %cst = arith.constant 0.000000e+00 : f32
    %1 = vector.broadcast %cst : f32 to vector<8x128xf32>
    %2 = arith.maximumf %0, %1 : vector<8x128xf32>
    %c0_1 = arith.constant 0 : index
    %c0_2 = arith.constant 0 : index
    %3 = vector.load %arg2[%c0_1, %c0_2] : memref<128x64xf32, #tpu.memory_space<vmem>>, vector<128x64xf32>
    %cst_3 = arith.constant dense<0.000000e+00> : vector<8x64xf32>
    %4 = tpu.matmul %2, %3, %cst_3 {dimension_numbers = #tpu.dot_dimension_numbers<[1], [0], [0], [1], [0, 0, 1, 1], [], []>} : vector<8x128xf32>, vector<128x64xf32>, vector<8x64xf32> -> vector<8x64xf32>
    %c0_4 = arith.constant 0 : index
    %c0_5 = arith.constant 0 : index
    %5 = vector.load %arg3[%c0_4, %c0_5] : memref<1x64xf32, #tpu.memory_space<vmem>>, vector<1x64xf32>
    %6 = vector.broadcast %5 : vector<1x64xf32> to vector<8x64xf32>
    %7 = arith.addf %4, %6 : vector<8x64xf32>
    %cst_6 = arith.constant 0.000000e+00 : f32
    %8 = vector.broadcast %cst_6 : f32 to vector<8x64xf32>
    %9 = arith.maximumf %7, %8 : vector<8x64xf32>
    %c0_7 = arith.constant 0 : index
    %c0_8 = arith.constant 0 : index
    %10 = vector.load %arg6[%c0_7, %c0_8] : memref<1x64xf32, #tpu.memory_space<vmem>>, vector<1x64xf32>
    %11 = vector.broadcast %10 : vector<1x64xf32> to vector<8x64xf32>
    %12 = arith.subf %9, %11 : vector<8x64xf32>
    %c0_9 = arith.constant 0 : index
    %c0_10 = arith.constant 0 : index
    %13 = vector.load %arg7[%c0_9, %c0_10] : memref<1x64xf32, #tpu.memory_space<vmem>>, vector<1x64xf32>
    %cst_11 = arith.constant 9.99999974E-6 : f32
    %14 = vector.broadcast %cst_11 : f32 to vector<1x64xf32>
    %15 = arith.addf %13, %14 : vector<1x64xf32>
    %16 = math.rsqrt %15 : vector<1x64xf32>
    %17 = vector.broadcast %16 : vector<1x64xf32> to vector<8x64xf32>
    %18 = arith.mulf %12, %17 : vector<8x64xf32>
    %c0_12 = arith.constant 0 : index
    %c0_13 = arith.constant 0 : index
    %19 = vector.load %arg4[%c0_12, %c0_13] : memref<1x64xf32, #tpu.memory_space<vmem>>, vector<1x64xf32>
    %20 = vector.broadcast %19 : vector<1x64xf32> to vector<8x64xf32>
    %21 = arith.mulf %18, %20 : vector<8x64xf32>
    %c0_14 = arith.constant 0 : index
    %c0_15 = arith.constant 0 : index
    %22 = vector.load %arg5[%c0_14, %c0_15] : memref<1x64xf32, #tpu.memory_space<vmem>>, vector<1x64xf32>
    %23 = vector.broadcast %22 : vector<1x64xf32> to vector<8x64xf32>
    %24 = arith.addf %21, %23 : vector<8x64xf32>
    %c0_16 = arith.constant 0 : index
    %c0_17 = arith.constant 0 : index
    %25 = vector.load %arg8[%c0_16, %c0_17] : memref<64x128xf32, #tpu.memory_space<vmem>>, vector<64x128xf32>
    %cst_18 = arith.constant dense<0.000000e+00> : vector<8x128xf32>
    %26 = tpu.matmul %24, %25, %cst_18 {dimension_numbers = #tpu.dot_dimension_numbers<[1], [0], [0], [1], [0, 0, 1, 1], [], []>} : vector<8x64xf32>, vector<64x128xf32>, vector<8x128xf32> -> vector<8x128xf32>
    %c0_19 = arith.constant 0 : index
    %c0_20 = arith.constant 0 : index
    %27 = vector.load %arg9[%c0_19, %c0_20] : memref<1x128xf32, #tpu.memory_space<vmem>>, vector<1x128xf32>
    %28 = vector.broadcast %27 : vector<1x128xf32> to vector<8x128xf32>
    %29 = arith.addf %26, %28 : vector<8x128xf32>
    %30 = arith.addf %0, %29 : vector<8x128xf32>
    %c0_21 = arith.constant 0 : index
    %c0_22 = arith.constant 0 : index
    %31 = vector.load %arg10[%c0_21, %c0_22] : memref<8x128xf32, #tpu.memory_space<vmem>>, vector<8x128xf32>
    tpu.vector_store %arg10[%c0_21, %c0_22], %30 {strides = array<i32>} : memref<8x128xf32, #tpu.memory_space<vmem>>, vector<8x128xf32>,
    return
  }
  func.func @transform_0(%arg0: i32) -> (i32, i32) {
    %c0_i32 = arith.constant 0 : i32
    %c0_i32_0 = arith.constant 0 : i32
    return %arg0, %c0_i32 : i32, i32
  }
  func.func @transform_1(%arg0: i32) -> (i32, i32) {
    %c0_i32 = arith.constant 0 : i32
    %c0_i32_0 = arith.constant 0 : i32
    %c0_i32_1 = arith.constant 0 : i32
    return %c0_i32, %c0_i32_0 : i32, i32
  }
  func.func @transform_2(%arg0: i32) -> (i32, i32) {
    %c0_i32 = arith.constant 0 : i32
    %c0_i32_0 = arith.constant 0 : i32
    %c0_i32_1 = arith.constant 0 : i32
    return %c0_i32, %c0_i32_0 : i32, i32
  }
  func.func @transform_3(%arg0: i32) -> (i32, i32) {
    %c0_i32 = arith.constant 0 : i32
    %c0_i32_0 = arith.constant 0 : i32
    %c0_i32_1 = arith.constant 0 : i32
    return %c0_i32, %c0_i32_0 : i32, i32
  }
  func.func @transform_4(%arg0: i32) -> (i32, i32) {
    %c0_i32 = arith.constant 0 : i32
    %c0_i32_0 = arith.constant 0 : i32
    %c0_i32_1 = arith.constant 0 : i32
    return %c0_i32, %c0_i32_0 : i32, i32
  }
  func.func @transform_5(%arg0: i32) -> (i32, i32) {
    %c0_i32 = arith.constant 0 : i32
    %c0_i32_0 = arith.constant 0 : i32
    %c0_i32_1 = arith.constant 0 : i32
    return %c0_i32, %c0_i32_0 : i32, i32
  }
  func.func @transform_6(%arg0: i32) -> (i32, i32) {
    %c0_i32 = arith.constant 0 : i32
    %c0_i32_0 = arith.constant 0 : i32
    %c0_i32_1 = arith.constant 0 : i32
    return %c0_i32, %c0_i32_0 : i32, i32
  }
  func.func @transform_7(%arg0: i32) -> (i32, i32) {
    %c0_i32 = arith.constant 0 : i32
    %c0_i32_0 = arith.constant 0 : i32
    %c0_i32_1 = arith.constant 0 : i32
    return %c0_i32, %c0_i32_0 : i32, i32
  }
  func.func @transform_8(%arg0: i32) -> (i32, i32) {
    %c0_i32 = arith.constant 0 : i32
    %c0_i32_0 = arith.constant 0 : i32
    %c0_i32_1 = arith.constant 0 : i32
    return %c0_i32, %c0_i32_0 : i32, i32
  }
  func.func @transform_9(%arg0: i32) -> (i32, i32) {
    %c0_i32 = arith.constant 0 : i32
    %c0_i32_0 = arith.constant 0 : i32
    return %arg0, %c0_i32 : i32, i32
  }
}

</mosaic_0001>

<llo_original>
// kernel: resnet_forward.1
$region0: #{resnet_forward.1}
  #allocation0 [shape = 'u32[]', space=smem, size = 0x4, offset = 0x4, fixed_abs, tag = 'smem constant byte address 0x4 - core index']
  #allocation1 [shape = 'u32[144,128]{1,0:T(1,128)}', space=vmem, size = 0x12000, scoped, tag = 'internal scratch']
  %s0 = inlined_call_operand.vmem [shape: f32[8,128], index: 0, kind: input, shape index: {}]
  %s1 = inlined_call_operand.vmem [shape: f32[128,64], index: 1, kind: input, shape index: {}]
  %s2 = inlined_call_operand.vmem [shape: f32[1,64], index: 2, kind: input, shape index: {}]
  %s3 = inlined_call_operand.vmem [shape: f32[1,64], index: 3, kind: input, shape index: {}]
  %s4 = inlined_call_operand.vmem [shape: f32[1,64], index: 4, kind: input, shape index: {}]
  %s5 = inlined_call_operand.vmem [shape: f32[1,64], index: 5, kind: input, shape index: {}]
  %s6 = inlined_call_operand.vmem [shape: f32[1,64], index: 6, kind: input, shape index: {}]
  %s7 = inlined_call_operand.vmem [shape: f32[64,128], index: 7, kind: input, shape index: {}]
  %s8 = inlined_call_operand.vmem [shape: f32[1,128], index: 8, kind: input, shape index: {}]
  %s9 = inlined_call_operand.hbm [shape: f32[8,128], index: 9, kind: output, shape index: {}]
  %s10 = sld [smem:[#allocation0]]
  $region46: #{resnet_forward.1} parent=0
    _
  %s12 = ssub.s32 1, %s10
  %s13 = scalar_select 0, %s12, %s10
  $region1: #{resnet_forward.1} parent=0
    #allocation2 [shape = 'u8[4096]{0}', space=vmem, size = 0x1000, scoped, tag = 'output window, operand 0, single buffered']
    #allocation3 [shape = 's32[1]{0}', space=sflag, size = 0x4, scoped, tag = 'scoped memory for resnet_forward.1']
    %14 = vsyncpa [#allocation3], 0
    // Predicated region
    $region2: #{resnet_forward.1} parent=1 // pred_check
      _
    $region3: #{resnet_forward.1} parent=1 // pred_check_branch
      %16 = sbr.rel (0) target = $region5
    $region4: #{resnet_forward.1} parent=1 // pred_region
      _
    $region5: #{resnet_forward.1} parent=1 // pred_fallthru
      _
    // Predicated region
    $region6: #{resnet_forward.1} parent=1 // pred_check
      _
    $region7: #{resnet_forward.1} parent=1 // pred_check_branch
      %18 = sbr.rel (0) target = $region9
    $region8: #{resnet_forward.1} parent=1 // pred_region
      _
    $region9: #{resnet_forward.1} parent=1 // pred_fallthru
      _
    // Predicated region
    $region10: #{resnet_forward.1} parent=1 // pred_check
      _
    $region11: #{resnet_forward.1} parent=1 // pred_check_branch
      %20 = sbr.rel (0) target = $region13
    $region12: #{resnet_forward.1} parent=1 // pred_region
      _
    $region13: #{resnet_forward.1} parent=1 // pred_fallthru
      _
    // Predicated region
    $region14: #{resnet_forward.1} parent=1 // pred_check
      _
    $region15: #{resnet_forward.1} parent=1 // pred_check_branch
      %22 = sbr.rel (0) target = $region17
    $region16: #{resnet_forward.1} parent=1 // pred_region
      _
    $region17: #{resnet_forward.1} parent=1 // pred_fallthru
      _
    // Predicated region
    $region18: #{resnet_forward.1} parent=1 // pred_check
      _
    $region19: #{resnet_forward.1} parent=1 // pred_check_branch
      %24 = sbr.rel (0) target = $region21
    $region20: #{resnet_forward.1} parent=1 // pred_region
      _
    $region21: #{resnet_forward.1} parent=1 // pred_fallthru
      _
    // Predicated region
    $region22: #{resnet_forward.1} parent=1 // pred_check
      _
    $region23: #{resnet_forward.1} parent=1 // pred_check_branch
      %26 = sbr.rel (0) target = $region25
    $region24: #{resnet_forward.1} parent=1 // pred_region
      _
    $region25: #{resnet_forward.1} parent=1 // pred_fallthru
      _
    // Predicated region
    $region26: #{resnet_forward.1} parent=1 // pred_check
      _
    $region27: #{resnet_forward.1} parent=1 // pred_check_branch
      %28 = sbr.rel (0) target = $region29
    $region28: #{resnet_forward.1} parent=1 // pred_region
      _
    $region29: #{resnet_forward.1} parent=1 // pred_fallthru
      _
    // Predicated region
    $region30: #{resnet_forward.1} parent=1 // pred_check
      _
    $region31: #{resnet_forward.1} parent=1 // pred_check_branch
      %30 = sbr.rel (0) target = $region33
    $region32: #{resnet_forward.1} parent=1 // pred_region
      _
    $region33: #{resnet_forward.1} parent=1 // pred_fallthru
      _
    // Predicated region
    $region34: #{resnet_forward.1} parent=1 // pred_check
      _
    $region35: #{resnet_forward.1} parent=1 // pred_check_branch
      %32 = sbr.rel (0) target = $region37
    $region36: #{resnet_forward.1} parent=1 // pred_region
      _
    $region37: #{resnet_forward.1} parent=1 // pred_fallthru
      _
    %v33 = vld [vmem:[%s0] sm:$0xff]
    %v34 = vmax.f32 %v33, 0.0
    %v35 = vld [vmem:[%s1] sm:$0xff]
    %v36 = vld [vmem:[%s1 + $0x8] sm:$0xff]
    %v37 = vld [vmem:[%s1 + $0x10] sm:$0xff]
    %v38 = vld [vmem:[%s1 + $0x18] sm:$0xff]
    %v39 = vld [vmem:[%s1 + $0x20] sm:$0xff]
    %v40 = vld [vmem:[%s1 + $0x28] sm:$0xff]
    %v41 = vld [vmem:[%s1 + $0x30] sm:$0xff]
    %v42 = vld [vmem:[%s1 + $0x38] sm:$0xff]
    %v43 = vld [vmem:[%s1 + $0x40] sm:$0xff]
    %v44 = vld [vmem:[%s1 + $0x48] sm:$0xff]
    %v45 = vld [vmem:[%s1 + $0x50] sm:$0xff]
    %v46 = vld [vmem:[%s1 + $0x58] sm:$0xff]
    %v47 = vld [vmem:[%s1 + $0x60] sm:$0xff]
    %v48 = vld [vmem:[%s1 + $0x68] sm:$0xff]
    %v49 = vld [vmem:[%s1 + $0x70] sm:$0xff]
    %v50 = vld [vmem:[%s1 + $0x78] sm:$0xff]
    %v51 = vld [vmem:[%s2] sm:$0x1]
    %v53 = vlaneseq
    %v54 = vshrl.u32 %v53, 7
    %v55 = vsub.s32 0, %v54
    %v56 = vrot.slane %v51, %v55
    %58 = vmatprep.subr.mxu0 0.0
    %59 = vmatpush1.msra.mxu0 %v35
    %60 = vmatprep.subr.mxu0 0.0
    %61 = vmatpush1.msra.mxu0 %v36
    %62 = vmatprep.subr.mxu0 0.0
    %63 = vmatpush1.msra.mxu0 %v37
    %64 = vmatprep.subr.mxu0 0.0
    %65 = vmatpush1.msra.mxu0 %v38
    %66 = vmatprep.subr.mxu0 0.0
    %67 = vmatpush1.msra.mxu0 %v39
    %68 = vmatprep.subr.mxu0 0.0
    %69 = vmatpush1.msra.mxu0 %v40
    %70 = vmatprep.subr.mxu0 0.0
    %71 = vmatpush1.msra.mxu0 %v41
    %72 = vmatprep.subr.mxu0 0.0
    %73 = vmatpush1.msra.mxu0 %v42
    %74 = vmatprep.subr.mxu0 0.0
    %75 = vmatpush1.msra.mxu0 %v43
    %76 = vmatprep.subr.mxu0 0.0
    %77 = vmatpush1.msra.mxu0 %v44
    %78 = vmatprep.subr.mxu0 0.0
    %79 = vmatpush1.msra.mxu0 %v45
    %80 = vmatprep.subr.mxu0 0.0
    %81 = vmatpush1.msra.mxu0 %v46
    %82 = vmatprep.subr.mxu0 0.0
    %83 = vmatpush1.msra.mxu0 %v47
    %84 = vmatprep.subr.mxu0 0.0
    %85 = vmatpush1.msra.mxu0 %v48
    %86 = vmatprep.subr.mxu0 0.0
    %87 = vmatpush1.msra.mxu0 %v49
    %88 = vmatprep.subr.mxu0 0.0
    %89 = vmatpush1.msra.mxu0 %v50
    %90 = vmatprep.subr.mxu0 0.0
    %91 = vmatpush1.msra.mxu0 0.0
    %92 = vmatprep.subr.mxu0 0.0
    %93 = vmatpush1.msra.mxu0 0.0
    %94 = vmatprep.subr.mxu0 0.0
    %95 = vmatpush1.msra.mxu0 0.0
    %96 = vmatprep.subr.mxu0 0.0
    %97 = vmatpush1.msra.mxu0 0.0
    %98 = vmatprep.subr.mxu0 0.0
    %99 = vmatpush1.msra.mxu0 0.0
    %100 = vmatprep.subr.mxu0 0.0
    %101 = vmatpush1.msra.mxu0 0.0
    %102 = vmatprep.subr.mxu0 0.0
    %103 = vmatpush1.msra.mxu0 0.0
    %104 = vmatprep.subr.mxu0 0.0
    %105 = vmatpush1.msra.mxu0 0.0
    %106 = vmatprep.subr.mxu0 0.0
    %107 = vmatpush1.msra.mxu0 0.0
    %108 = vmatprep.subr.mxu0 0.0
    %109 = vmatpush1.msra.mxu0 0.0
    %110 = vmatprep.subr.mxu0 0.0
    %111 = vmatpush1.msra.mxu0 0.0
    %112 = vmatprep.subr.mxu0 0.0
    %113 = vmatpush1.msra.mxu0 0.0
    %114 = vmatprep.subr.mxu0 0.0
    %115 = vmatpush1.msra.mxu0 0.0
    %116 = vmatprep.subr.mxu0 0.0
    %117 = vmatpush1.msra.mxu0 0.0
    %118 = vmatprep.subr.mxu0 0.0
    %119 = vmatpush1.msra.mxu0 0.0
    %120 = vmatprep.subr.mxu0 0.0
    %121 = vmatpush1.msra.mxu0 0.0
    %122 = vmatprep.mubr.f32.mxu0 0.0
    %123 = vmatmul.mubr.f32.gmra.mrb[0].mxu0 %v34
    %v124 = vpop.f32.mrb[0].mxu0
    %v125 = vadd.f32 %v56, %v124
    %v126 = vpop.f32.mrb[0].mxu0
    %127 = vdwg.mxu0
    %v128 = vmax.f32 %v125, 0.0
    %v129 = vld [vmem:[%s5] sm:$0x1]
    %v131 = vlaneseq
    %v132 = vshrl.u32 %v131, 7
    %v133 = vsub.s32 0, %v132
    %v134 = vrot.slane %v129, %v133
    %v136 = vsub.f32 %v128, %v134
    %v137 = vld [vmem:[%s6] sm:$0x1]
    %v138 = vadd.f32 %v137, 1e-05
    %v139 = vrsqrt.pop %v138
    %v141 = vlaneseq
    %v142 = vshrl.u32 %v141, 7
    %v143 = vsub.s32 0, %v142
    %v144 = vrot.slane %v139, %v143
    %v146 = vmul.f32 %v136, %v144
    %v147 = vld [vmem:[%s3] sm:$0x1]
    %v149 = vlaneseq
    %v150 = vshrl.u32 %v149, 7
    %v151 = vsub.s32 0, %v150
    %v152 = vrot.slane %v147, %v151
    %v154 = vmul.f32 %v146, %v152
    %v155 = vld [vmem:[%s4] sm:$0x1]
    %v157 = vlaneseq
    %v158 = vshrl.u32 %v157, 7
    %v159 = vsub.s32 0, %v158
    %v160 = vrot.slane %v155, %v159
    %v162 = vadd.f32 %v154, %v160
    %v163 = vld [vmem:[%s7] sm:$0xff]
    %v164 = vld [vmem:[%s7 + $0x8] sm:$0xff]
    %v165 = vld [vmem:[%s7 + $0x10] sm:$0xff]
    %v166 = vld [vmem:[%s7 + $0x18] sm:$0xff]
    %v167 = vld [vmem:[%s7 + $0x20] sm:$0xff]
    %v168 = vld [vmem:[%s7 + $0x28] sm:$0xff]
    %v169 = vld [vmem:[%s7 + $0x30] sm:$0xff]
    %v170 = vld [vmem:[%s7 + $0x38] sm:$0xff]
    %v171 = vld [vmem:[%s8] sm:$0x1]
    %v173 = vlaneseq
    %v174 = vshrl.u32 %v173, 7
    %v175 = vsub.s32 0, %v174
    %v176 = vrot.slane %v171, %v175
    %vm178 = vcmask 523264
    %v180 = vsel %vm178, %v162, 0
    %182 = vmatprep.subr.mxu0 0.0
    %183 = vmatpush1.msra.mxu0 %v163
    %184 = vmatprep.subr.mxu0 0.0
    %185 = vmatpush1.msra.mxu0 %v164
    %186 = vmatprep.subr.mxu0 0.0
    %187 = vmatpush1.msra.mxu0 %v165
    %188 = vmatprep.subr.mxu0 0.0
    %189 = vmatpush1.msra.mxu0 %v166
    %190 = vmatprep.subr.mxu0 0.0
    %191 = vmatpush1.msra.mxu0 %v167
    %192 = vmatprep.subr.mxu0 0.0
    %193 = vmatpush1.msra.mxu0 %v168
    %194 = vmatprep.subr.mxu0 0.0
    %195 = vmatpush1.msra.mxu0 %v169
    %196 = vmatprep.subr.mxu0 0.0
    %197 = vmatpush1.msra.mxu0 %v170
    %198 = vmatprep.subr.mxu0 0.0
    %199 = vmatpush1.msra.mxu0 0.0
    %200 = vmatprep.subr.mxu0 0.0
    %201 = vmatpush1.msra.mxu0 0.0
    %202 = vmatprep.subr.mxu0 0.0
    %203 = vmatpush1.msra.mxu0 0.0
    %204 = vmatprep.subr.mxu0 0.0
    %205 = vmatpush1.msra.mxu0 0.0
    %206 = vmatprep.subr.mxu0 0.0
    %207 = vmatpush1.msra.mxu0 0.0
    %208 = vmatprep.subr.mxu0 0.0
    %209 = vmatpush1.msra.mxu0 0.0
    %210 = vmatprep.subr.mxu0 0.0
    %211 = vmatpush1.msra.mxu0 0.0
    %212 = vmatprep.subr.mxu0 0.0
    %213 = vmatpush1.msra.mxu0 0.0
    %214 = vmatprep.subr.mxu0 0.0
    %215 = vmatpush1.msra.mxu0 0.0
    %216 = vmatprep.subr.mxu0 0.0
    %217 = vmatpush1.msra.mxu0 0.0
    %218 = vmatprep.subr.mxu0 0.0
    %219 = vmatpush1.msra.mxu0 0.0
    %220 = vmatprep.subr.mxu0 0.0
    %221 = vmatpush1.msra.mxu0 0.0
    %222 = vmatprep.subr.mxu0 0.0
    %223 = vmatpush1.msra.mxu0 0.0
    %224 = vmatprep.subr.mxu0 0.0
    %225 = vmatpush1.msra.mxu0 0.0
    %226 = vmatprep.subr.mxu0 0.0
    %227 = vmatpush1.msra.mxu0 0.0
    %228 = vmatprep.subr.mxu0 0.0
    %229 = vmatpush1.msra.mxu0 0.0
    %230 = vmatprep.subr.mxu0 0.0
    %231 = vmatpush1.msra.mxu0 0.0
    %232 = vmatprep.subr.mxu0 0.0
    %233 = vmatpush1.msra.mxu0 0.0
    %234 = vmatprep.subr.mxu0 0.0
    %235 = vmatpush1.msra.mxu0 0.0
    %236 = vmatprep.subr.mxu0 0.0
    %237 = vmatpush1.msra.mxu0 0.0
    %238 = vmatprep.subr.mxu0 0.0
    %239 = vmatpush1.msra.mxu0 0.0
    %240 = vmatprep.subr.mxu0 0.0
    %241 = vmatpush1.msra.mxu0 0.0
    %242 = vmatprep.subr.mxu0 0.0
    %243 = vmatpush1.msra.mxu0 0.0
    %244 = vmatprep.subr.mxu0 0.0
    %245 = vmatpush1.msra.mxu0 0.0
    %246 = vmatprep.mubr.f32.mxu0 0.0
    %247 = vmatmul.mubr.f32.gmra.mrb[0].mxu0 %v180
    %v248 = vpop.f32.mrb[0].mxu0
    %v249 = vadd.f32 %v176, %v248
    %v250 = vpop.f32.mrb[0].mxu0
    %251 = vdwg.mxu0
    %v252 = vadd.f32 %v33, %v249
    %253 = vst [vmem:[#allocation2] sm:$0xff] %v252
    // Predicated region
    $region38: #{resnet_forward.1} parent=1 // pred_check
      _
    $region39: #{resnet_forward.1} parent=1 // pred_check_branch
      %255 = sbr.rel (0) target = $region41
    $region40: #{resnet_forward.1} parent=1 // pred_region
      %s257 = ssub.s32 128, 128
      %258 = vsyncadd [#allocation3], %s257
      %s260 = sshll.u32 [#allocation2], 4
      %s261 = int_to_ptr.vmem [resolvable:$true] %s260
      %263 = dma.vmem_to_hbm [thread:$0]  %s261, 128, %s9, [#allocation3]
    $region41: #{resnet_forward.1} parent=1 // pred_fallthru
      _
    // Predicated region
    $region42: #{resnet_forward.1} parent=1 // pred_check
      _
    $region43: #{resnet_forward.1} parent=1 // pred_check_branch
      %265 = sbr.rel (0) target = $region45
    $region44: #{resnet_forward.1} parent=1 // pred_region
      %266 = dma.done [#allocation3], 128
    $region45: #{resnet_forward.1} parent=1 // pred_fallthru
      _
    %267 = vsyncpa [#allocation3], 1

</llo_original>
